<compile_context>
chip_gen: v6e
topology: v6e:2x2x1
jax: 0.10.0
libtpu: 0.0.40
codegen_flags: <defaults>
</compile_context>

<pallas_src>
import math
from functools import partial

import jax
import jax.numpy as jnp
from jax.experimental import pallas as pl
from jax.experimental.pallas import tpu as pltpu


# -----------------------------------------------------------------------------
# Kernels
# -----------------------------------------------------------------------------
def _stlstm_train_kernel(
    x_ref, h_ref, c_ref,
    tup_ref, tlow_ref, sup_ref, slow_ref,
    tud_ref, tld_ref, sud_ref, sld_ref, len_ref,
    wx_ref, wh_ref, wt_ref, ws_ref, b_ref,
    h_out_ref, c_out_ref,
    *, hidden_dim,
):
    """predict == 0 path of STLSTM._compute_cell (full spatio-temporal gating)."""
    H = hidden_dim

    x = x_ref[...]
    h = h_ref[...]
    c = c_ref[...]
    L = len_ref[...]                                   # (B, 1) mask

    # Decay inputs: single FMA each, (B,1) scale folded into the broadcast mul.
    Ttd = tup_ref[...] * (tud_ref[...] * (1.0 / 60.0)) \
        + tlow_ref[...] * (tld_ref[...] * (1.0 / 60.0))
    Std = sup_ref[...] * (sud_ref[...] * (1.0 / 100.0)) \
        + slow_ref[...] * (sld_ref[...] * (1.0 / 100.0))

    # One lane-dense (B, 4H) pre-activation.  Gate order on the N axis:
    # [ i | f | o | c ]; Wt/Ws have zero columns in the c block.
    z = (jnp.dot(x,   wx_ref[...], preferred_element_type=jnp.float32)
         + jnp.dot(h,   wh_ref[...], preferred_element_type=jnp.float32)
         + jnp.dot(Ttd, wt_ref[...], preferred_element_type=jnp.float32)
         + jnp.dot(Std, ws_ref[...], preferred_element_type=jnp.float32)
         + b_ref[...])

    i = jax.nn.sigmoid(z[:, 0 * H:1 * H])
    f = jax.nn.sigmoid(z[:, 1 * H:2 * H])
    o = jax.nn.sigmoid(z[:, 2 * H:3 * H])
    Cg = jnp.tanh(z[:, 3 * H:4 * H])

    # Masked update.  NOTE: the reference intentionally applies the mask to the
    # gates AND to the state sum, giving L^2 / L^3 factors; kept as-is.
    L2 = L * L
    L3 = L2 * L
    not_L = 1.0 - L

    Ct = f * c * L2 + i * Cg * L3 + c * not_L
    h_new = o * jnp.tanh(Ct) * L2 + h * not_L

    h_out_ref[...] = h_new
    c_out_ref[...] = Ct


def _stlstm_predict_kernel(
    x_ref, h_ref, c_ref, wx_ref, wh_ref, b_ref, h_out_ref, c_out_ref,
    *, hidden_dim,
):
    """predict != 0 path of STLSTM._compute_cell (plain LSTM cell)."""
    H = hidden_dim
    c = c_ref[...]

    z = (jnp.dot(x_ref[...], wx_ref[...], preferred_element_type=jnp.float32)
         + jnp.dot(h_ref[...], wh_ref[...], preferred_element_type=jnp.float32)
         + b_ref[...])

    i = jax.nn.sigmoid(z[:, 0 * H:1 * H])
    f = jax.nn.sigmoid(z[:, 1 * H:2 * H])
    o = jax.nn.sigmoid(z[:, 2 * H:3 * H])
    Cg = jnp.tanh(z[:, 3 * H:4 * H])

    Ct = f * c + i * Cg
    h_out_ref[...] = o * jnp.tanh(Ct)
    c_out_ref[...] = Ct


# -----------------------------------------------------------------------------
# Parameter init / fusion (done once, NOT per forward call)
# -----------------------------------------------------------------------------
def init_stlstm_params(key, hidden_dim, input_dim, d_dim, d1_dim):
    """Deterministic uniform(-stdv, stdv) init, like _reset_parameters."""
    stdv = 1.0 / math.sqrt(hidden_dim)
    names_shapes = [
        ("Wi", (input_dim, hidden_dim)), ("Wf", (input_dim, hidden_dim)),
        ("Wc", (input_dim, hidden_dim)), ("Wog", (input_dim, hidden_dim)),
        ("Ui", (hidden_dim, hidden_dim)), ("Uf", (hidden_dim, hidden_dim)),
        ("Uc", (hidden_dim, hidden_dim)), ("Uog", (hidden_dim, hidden_dim)),
        ("Ti", (d_dim, hidden_dim)), ("Tf", (d_dim, hidden_dim)),
        ("To", (d_dim, hidden_dim)),
        ("Si", (d1_dim, hidden_dim)), ("Sf", (d1_dim, hidden_dim)),
        ("So", (d1_dim, hidden_dim)),
        ("bi", (hidden_dim,)), ("bf", (hidden_dim,)),
        ("bc", (hidden_dim,)), ("bo", (hidden_dim,)),
    ]
    keys = jax.random.split(key, len(names_shapes))
    params = {}
    for k, (name, shape) in zip(keys, names_shapes):
        params[name] = jax.random.uniform(
            k, shape, dtype=jnp.float32, minval=-stdv, maxval=stdv)
    return params


def fuse_stlstm_params(p):
    """Gate-concatenate weights on the N axis (gate order i, f, o, c)."""
    H = p["Wi"].shape[1]
    d = p["Ti"].shape[0]
    d1 = p["Si"].shape[0]
    Wx = jnp.concatenate([p["Wi"], p["Wf"], p["Wog"], p["Wc"]], axis=1)   # (D_in, 4H)
    Wh = jnp.concatenate([p["Ui"], p["Uf"], p["Uog"], p["Uc"]], axis=1)   # (H, 4H)
    # c gate has no decay terms -> zero columns in its block.
    Wt = jnp.concatenate(
        [p["Ti"], p["Tf"], p["To"], jnp.zeros((d, H), jnp.float32)], axis=1)   # (d, 4H)
    Ws = jnp.concatenate(
        [p["Si"], p["Sf"], p["So"], jnp.zeros((d1, H), jnp.float32)], axis=1)  # (d1, 4H)
    b = jnp.concatenate([p["bi"], p["bf"], p["bo"], p["bc"]])[None, :]         # (1, 4H)
    return {"Wx": Wx, "Wh": Wh, "Wt": Wt, "Ws": Ws, "b": b}


# -----------------------------------------------------------------------------
# Forward wrapper (jitted; `predict` is static)
# -----------------------------------------------------------------------------
@partial(jax.jit, static_argnames=("predict",))
def stlstm_forward(fused, inputs1, tu, su, t_up, t_low, t_up_diff, t_low_diff,
                   s_up, s_low, s_up_diff, s_low_diff, inputs_length, h, c,
                   predict=0):
    """Matches STLSTM.forward.  `tu`, `su` are accepted but unused (as in the
    PyTorch module).  `predict` is a static Python flag."""
    del tu, su
    B = inputs1.shape[0]
    H = h.shape[1]

    vmem = pl.BlockSpec(memory_space=pltpu.MemorySpace.VMEM)
    out_shape = (jax.ShapeDtypeStruct((B, H), jnp.float32),
                 jax.ShapeDtypeStruct((B, H), jnp.float32))

    if predict == 0:
        args = (
            inputs1.astype(jnp.float32),
            h.astype(jnp.float32), c.astype(jnp.float32),
            t_up.astype(jnp.float32), t_low.astype(jnp.float32),
            s_up.astype(jnp.float32), s_low.astype(jnp.float32),
            t_up_diff.reshape(B, 1).astype(jnp.float32),
            t_low_diff.reshape(B, 1).astype(jnp.float32),
            s_up_diff.reshape(B, 1).astype(jnp.float32),
            s_low_diff.reshape(B, 1).astype(jnp.float32),
            inputs_length.reshape(B, 1).astype(jnp.float32),
            fused["Wx"], fused["Wh"], fused["Wt"], fused["Ws"], fused["b"],
        )
        kernel = partial(_stlstm_train_kernel, hidden_dim=H)
    else:
        args = (
            inputs1.astype(jnp.float32),
            h.astype(jnp.float32), c.astype(jnp.float32),
            fused["Wx"], fused["Wh"], fused["b"],
        )
        kernel = partial(_stlstm_predict_kernel, hidden_dim=H)

    return pl.pallas_call(
        kernel,
        out_shape=out_shape,
        in_specs=[vmem] * len(args),
        out_specs=(vmem, vmem),
    )(*args)


# -----------------------------------------------------------------------------
# Pure-JAX references (correctness sanity checks)
# -----------------------------------------------------------------------------
def stlstm_reference(p, x, t_up, t_low, t_up_diff, t_low_diff,
                     s_up, s_low, s_up_diff, s_low_diff, L, h, c):
    Ttd = t_up * (t_up_diff / 60.0).reshape(-1, 1) + t_low * (t_low_diff / 60.0).reshape(-1, 1)
    Std = s_up * (s_up_diff / 100.0).reshape(-1, 1) + s_low * (s_low_diff / 100.0).reshape(-1, 1)
    L = L.reshape(-1, 1)
    i = jax.nn.sigmoid(x @ p["Wi"] + h @ p["Ui"] + Ttd @ p["Ti"] + Std @ p["Si"] + p["bi"]) * L
    f = jax.nn.sigmoid(x @ p["Wf"] + h @ p["Uf"] + Ttd @ p["Tf"] + Std @ p["Sf"] + p["bf"]) * L
    o = jax.nn.sigmoid(x @ p["Wog"] + h @ p["Uog"] + Ttd @ p["To"] + Std @ p["So"] + p["bo"]) * L
    C = jnp.tanh(x @ p["Wc"] + h @ p["Uc"] + p["bc"]) * L
    Ct = (f * c + i * C) * L + c * (1.0 - L)
    hn = o * jnp.tanh(Ct) * L + h * (1.0 - L)
    return hn, Ct


def stlstm_predict_reference(p, x, h, c):
    i = jax.nn.sigmoid(x @ p["Wi"] + h @ p["Ui"] + p["bi"])
    f = jax.nn.sigmoid(x @ p["Wf"] + h @ p["Uf"] + p["bf"])
    o = jax.nn.sigmoid(x @ p["Wog"] + h @ p["Uog"] + p["bo"])
    C = jnp.tanh(x @ p["Wc"] + h @ p["Uc"] + p["bc"])
    Ct = f * c + i * C
    return o * jnp.tanh(Ct), Ct


# -----------------------------------------------------------------------------
# Demo
# -----------------------------------------------------------------------------
if __name__ == "__main__":
    B, hidden_dim, input_dim, d_dim, d1_dim = 8, 32, 16, 8, 8

    key = jax.random.PRNGKey(0)
    kp, *ks = jax.random.split(key, 16)
    params = init_stlstm_params(kp, hidden_dim, input_dim, d_dim, d1_dim)
    fused = fuse_stlstm_params(params)          # done once, reused every step

    x        = jax.random.normal(ks[0], (B, input_dim), dtype=jnp.float32)
    tu       = jax.random.normal(ks[1], (B, d_dim), dtype=jnp.float32)   # unused
    su       = jax.random.normal(ks[2], (B, d1_dim), dtype=jnp.float32)  # unused
    t_up     = jax.random.normal(ks[3], (B, d_dim), dtype=jnp.float32)
    t_low    = jax.random.normal(ks[4], (B, d_dim), dtype=jnp.float32)
    t_up_d   = jax.random.uniform(ks[5], (B,), dtype=jnp.float32, maxval=120.0)
    t_low_d  = jax.random.uniform(ks[6], (B,), dtype=jnp.float32, maxval=120.0)
    s_up     = jax.random.normal(ks[7], (B, d1_dim), dtype=jnp.float32)
    s_low    = jax.random.normal(ks[8], (B, d1_dim), dtype=jnp.float32)
    s_up_d   = jax.random.uniform(ks[9], (B,), dtype=jnp.float32, maxval=200.0)
    s_low_d  = jax.random.uniform(ks[10], (B,), dtype=jnp.float32, maxval=200.0)
    lengths  = (jax.random.uniform(ks[11], (B, 1)) > 0.3).astype(jnp.float32)
    h0       = jax.random.normal(ks[12], (B, hidden_dim), dtype=jnp.float32)
    c0       = jax.random.normal(ks[13], (B, hidden_dim), dtype=jnp.float32)

    # predict == 0 path (full spatio-temporal gating)
    h1, c1 = stlstm_forward(fused, x, tu, su, t_up, t_low, t_up_d, t_low_d,
                            s_up, s_low, s_up_d, s_low_d, lengths, h0, c0,
                            predict=0)
    jax.block_until_ready((h1, c1))

    # predict != 0 path (plain LSTM cell)
    h2, c2 = stlstm_forward(fused, x, tu, su, t_up, t_low, t_up_d, t_low_d,
                            s_up, s_low, s_up_d, s_low_d, lengths, h0, c0,
                            predict=1)
    jax.block_until_ready((h2, c2))

    # sanity checks against pure-JAX references
    h_ref, c_ref = stlstm_reference(params, x, t_up, t_low, t_up_d, t_low_d,
                                    s_up, s_low, s_up_d, s_low_d, lengths, h0, c0)
    assert jnp.allclose(h1, h_ref, atol=1e-5, rtol=1e-5)
    assert jnp.allclose(c1, c_ref, atol=1e-5, rtol=1e-5)

    h_pref, c_pref = stlstm_predict_reference(params, x, h0, c0)
    assert jnp.allclose(h2, h_pref, atol=1e-5, rtol=1e-5)
    assert jnp.allclose(c2, c_pref, atol=1e-5, rtol=1e-5)

    print("KERNEL_OK")
</pallas_src>

<mosaic_0001>
module attributes {stable_mosaic.version = 11 : i64} {
  func.func @_stlstm_train_kernel(%arg0: memref<8x16xf32, #tpu.memory_space<vmem>>, %arg1: memref<8x32xf32, #tpu.memory_space<vmem>>, %arg2: memref<8x32xf32, #tpu.memory_space<vmem>>, %arg3: memref<8x8xf32, #tpu.memory_space<vmem>>, %arg4: memref<8x8xf32, #tpu.memory_space<vmem>>, %arg5: memref<8x8xf32, #tpu.memory_space<vmem>>, %arg6: memref<8x8xf32, #tpu.memory_space<vmem>>, %arg7: memref<8x1xf32, #tpu.memory_space<vmem>>, %arg8: memref<8x1xf32, #tpu.memory_space<vmem>>, %arg9: memref<8x1xf32, #tpu.memory_space<vmem>>, %arg10: memref<8x1xf32, #tpu.memory_space<vmem>>, %arg11: memref<8x1xf32, #tpu.memory_space<vmem>>, %arg12: memref<16x128xf32, #tpu.memory_space<vmem>>, %arg13: memref<32x128xf32, #tpu.memory_space<vmem>>, %arg14: memref<8x128xf32, #tpu.memory_space<vmem>>, %arg15: memref<8x128xf32, #tpu.memory_space<vmem>>, %arg16: memref<1x128xf32, #tpu.memory_space<vmem>>, %arg17: memref<8x32xf32, #tpu.memory_space<vmem>>, %arg18: memref<8x32xf32, #tpu.memory_space<vmem>>) attributes {dimension_semantics = [], scalar_prefetch = 0 : i64, scratch_operands = 0 : i64, tpu.core_type = #tpu.core_type<tc>} {
    %c0 = arith.constant 0 : index
    %c0_0 = arith.constant 0 : index
    %0 = vector.load %arg0[%c0, %c0_0] : memref<8x16xf32, #tpu.memory_space<vmem>>, vector<8x16xf32>
    %c0_1 = arith.constant 0 : index
    %c0_2 = arith.constant 0 : index
    %1 = vector.load %arg1[%c0_1, %c0_2] : memref<8x32xf32, #tpu.memory_space<vmem>>, vector<8x32xf32>
    %c0_3 = arith.constant 0 : index
    %c0_4 = arith.constant 0 : index
    %2 = vector.load %arg2[%c0_3, %c0_4] : memref<8x32xf32, #tpu.memory_space<vmem>>, vector<8x32xf32>
    %c0_5 = arith.constant 0 : index
    %c0_6 = arith.constant 0 : index
    %3 = vector.load %arg11[%c0_5, %c0_6] : memref<8x1xf32, #tpu.memory_space<vmem>>, vector<8x1xf32>
    %c0_7 = arith.constant 0 : index
    %c0_8 = arith.constant 0 : index
    %4 = vector.load %arg3[%c0_7, %c0_8] : memref<8x8xf32, #tpu.memory_space<vmem>>, vector<8x8xf32>
    %c0_9 = arith.constant 0 : index
    %c0_10 = arith.constant 0 : index
    %5 = vector.load %arg7[%c0_9, %c0_10] : memref<8x1xf32, #tpu.memory_space<vmem>>, vector<8x1xf32>
    %cst = arith.constant 0.0166666675 : f32
    %6 = vector.broadcast %cst : f32 to vector<8x1xf32>
    %7 = arith.mulf %5, %6 : vector<8x1xf32>
    %8 = vector.broadcast %7 : vector<8x1xf32> to vector<8x8xf32>
    %9 = arith.mulf %4, %8 : vector<8x8xf32>
    %c0_11 = arith.constant 0 : index
    %c0_12 = arith.constant 0 : index
    %10 = vector.load %arg4[%c0_11, %c0_12] : memref<8x8xf32, #tpu.memory_space<vmem>>, vector<8x8xf32>
    %c0_13 = arith.constant 0 : index
    %c0_14 = arith.constant 0 : index
    %11 = vector.load %arg8[%c0_13, %c0_14] : memref<8x1xf32, #tpu.memory_space<vmem>>, vector<8x1xf32>
    %cst_15 = arith.constant 0.0166666675 : f32
    %12 = vector.broadcast %cst_15 : f32 to vector<8x1xf32>
    %13 = arith.mulf %11, %12 : vector<8x1xf32>
    %14 = vector.broadcast %13 : vector<8x1xf32> to vector<8x8xf32>
    %15 = arith.mulf %10, %14 : vector<8x8xf32>
    %16 = arith.addf %9, %15 : vector<8x8xf32>
    %c0_16 = arith.constant 0 : index
    %c0_17 = arith.constant 0 : index
    %17 = vector.load %arg5[%c0_16, %c0_17] : memref<8x8xf32, #tpu.memory_space<vmem>>, vector<8x8xf32>
    %c0_18 = arith.constant 0 : index
    %c0_19 = arith.constant 0 : index
    %18 = vector.load %arg9[%c0_18, %c0_19] : memref<8x1xf32, #tpu.memory_space<vmem>>, vector<8x1xf32>
    %cst_20 = arith.constant 0.00999999977 : f32
    %19 = vector.broadcast %cst_20 : f32 to vector<8x1xf32>
    %20 = arith.mulf %18, %19 : vector<8x1xf32>
    %21 = vector.broadcast %20 : vector<8x1xf32> to vector<8x8xf32>
    %22 = arith.mulf %17, %21 : vector<8x8xf32>
    %c0_21 = arith.constant 0 : index
    %c0_22 = arith.constant 0 : index
    %23 = vector.load %arg6[%c0_21, %c0_22] : memref<8x8xf32, #tpu.memory_space<vmem>>, vector<8x8xf32>
    %c0_23 = arith.constant 0 : index
    %c0_24 = arith.constant 0 : index
    %24 = vector.load %arg10[%c0_23, %c0_24] : memref<8x1xf32, #tpu.memory_space<vmem>>, vector<8x1xf32>
    %cst_25 = arith.constant 0.00999999977 : f32
    %25 = vector.broadcast %cst_25 : f32 to vector<8x1xf32>
    %26 = arith.mulf %24, %25 : vector<8x1xf32>
    %27 = vector.broadcast %26 : vector<8x1xf32> to vector<8x8xf32>
    %28 = arith.mulf %23, %27 : vector<8x8xf32>
    %29 = arith.addf %22, %28 : vector<8x8xf32>
    %c0_26 = arith.constant 0 : index
    %c0_27 = arith.constant 0 : index
    %30 = vector.load %arg12[%c0_26, %c0_27] : memref<16x128xf32, #tpu.memory_space<vmem>>, vector<16x128xf32>
    %cst_28 = arith.constant dense<0.000000e+00> : vector<8x128xf32>
    %31 = tpu.matmul %0, %30, %cst_28 {dimension_numbers = #tpu.dot_dimension_numbers<[1], [0], [0], [1], [0, 0, 1, 1], [], []>} : vector<8x16xf32>, vector<16x128xf32>, vector<8x128xf32> -> vector<8x128xf32>
    %c0_29 = arith.constant 0 : index
    %c0_30 = arith.constant 0 : index
    %32 = vector.load %arg13[%c0_29, %c0_30] : memref<32x128xf32, #tpu.memory_space<vmem>>, vector<32x128xf32>
    %cst_31 = arith.constant dense<0.000000e+00> : vector<8x128xf32>
    %33 = tpu.matmul %1, %32, %cst_31 {dimension_numbers = #tpu.dot_dimension_numbers<[1], [0], [0], [1], [0, 0, 1, 1], [], []>} : vector<8x32xf32>, vector<32x128xf32>, vector<8x128xf32> -> vector<8x128xf32>
    %34 = arith.addf %31, %33 : vector<8x128xf32>
    %c0_32 = arith.constant 0 : index
    %c0_33 = arith.constant 0 : index
    %35 = vector.load %arg14[%c0_32, %c0_33] : memref<8x128xf32, #tpu.memory_space<vmem>>, vector<8x128xf32>
    %cst_34 = arith.constant dense<0.000000e+00> : vector<8x128xf32>
    %36 = tpu.matmul %16, %35, %cst_34 {dimension_numbers = #tpu.dot_dimension_numbers<[1], [0], [0], [1], [0, 0, 1, 1], [], []>} : vector<8x8xf32>, vector<8x128xf32>, vector<8x128xf32> -> vector<8x128xf32>
    %37 = arith.addf %34, %36 : vector<8x128xf32>
    %c0_35 = arith.constant 0 : index
    %c0_36 = arith.constant 0 : index
    %38 = vector.load %arg15[%c0_35, %c0_36] : memref<8x128xf32, #tpu.memory_space<vmem>>, vector<8x128xf32>
    %cst_37 = arith.constant dense<0.000000e+00> : vector<8x128xf32>
    %39 = tpu.matmul %29, %38, %cst_37 {dimension_numbers = #tpu.dot_dimension_numbers<[1], [0], [0], [1], [0, 0, 1, 1], [], []>} : vector<8x8xf32>, vector<8x128xf32>, vector<8x128xf32> -> vector<8x128xf32>
    %40 = arith.addf %37, %39 : vector<8x128xf32>
    %c0_38 = arith.constant 0 : index
    %c0_39 = arith.constant 0 : index
    %41 = vector.load %arg16[%c0_38, %c0_39] : memref<1x128xf32, #tpu.memory_space<vmem>>, vector<1x128xf32>
    %42 = vector.broadcast %41 : vector<1x128xf32> to vector<8x128xf32>
    %43 = arith.addf %40, %42 : vector<8x128xf32>
    %44 = vector.extract_strided_slice %43 {offsets = [0, 0], sizes = [8, 32], strides = [1, 1]} : vector<8x128xf32> to vector<8x32xf32>
    %45 = arith.negf %44 : vector<8x32xf32>
    %46 = math.exp %45 : vector<8x32xf32>
    %cst_40 = arith.constant 1.000000e+00 : f32
    %47 = vector.broadcast %cst_40 : f32 to vector<8x32xf32>
    %48 = arith.addf %47, %46 : vector<8x32xf32>
    %49 = arith.divf %47, %48 : vector<8x32xf32>
    %50 = vector.extract_strided_slice %43 {offsets = [0, 32], sizes = [8, 32], strides = [1, 1]} : vector<8x128xf32> to vector<8x32xf32>
    %51 = arith.negf %50 : vector<8x32xf32>
    %52 = math.exp %51 : vector<8x32xf32>
    %cst_41 = arith.constant 1.000000e+00 : f32
    %53 = vector.broadcast %cst_41 : f32 to vector<8x32xf32>
    %54 = arith.addf %53, %52 : vector<8x32xf32>
    %55 = arith.divf %53, %54 : vector<8x32xf32>
    %56 = vector.extract_strided_slice %43 {offsets = [0, 64], sizes = [8, 32], strides = [1, 1]} : vector<8x128xf32> to vector<8x32xf32>
    %57 = arith.negf %56 : vector<8x32xf32>
    %58 = math.exp %57 : vector<8x32xf32>
    %cst_42 = arith.constant 1.000000e+00 : f32
    %59 = vector.broadcast %cst_42 : f32 to vector<8x32xf32>
    %60 = arith.addf %59, %58 : vector<8x32xf32>
    %61 = arith.divf %59, %60 : vector<8x32xf32>
    %62 = vector.extract_strided_slice %43 {offsets = [0, 96], sizes = [8, 32], strides = [1, 1]} : vector<8x128xf32> to vector<8x32xf32>
    %63 = math.tanh %62 : vector<8x32xf32>
    %64 = arith.mulf %3, %3 : vector<8x1xf32>
    %65 = arith.mulf %64, %3 : vector<8x1xf32>
    %cst_43 = arith.constant 1.000000e+00 : f32
    %66 = vector.broadcast %cst_43 : f32 to vector<8x1xf32>
    %67 = arith.subf %66, %3 : vector<8x1xf32>
    %68 = arith.mulf %55, %2 : vector<8x32xf32>
    %69 = vector.broadcast %64 : vector<8x1xf32> to vector<8x32xf32>
    %70 = arith.mulf %68, %69 : vector<8x32xf32>
    %71 = arith.mulf %49, %63 : vector<8x32xf32>
    %72 = vector.broadcast %65 : vector<8x1xf32> to vector<8x32xf32>
    %73 = arith.mulf %71, %72 : vector<8x32xf32>
    %74 = arith.addf %70, %73 : vector<8x32xf32>
    %75 = vector.broadcast %67 : vector<8x1xf32> to vector<8x32xf32>
    %76 = arith.mulf %2, %75 : vector<8x32xf32>
    %77 = arith.addf %74, %76 : vector<8x32xf32>
    %78 = math.tanh %77 : vector<8x32xf32>
    %79 = arith.mulf %61, %78 : vector<8x32xf32>
    %80 = vector.broadcast %64 : vector<8x1xf32> to vector<8x32xf32>
    %81 = arith.mulf %79, %80 : vector<8x32xf32>
    %82 = vector.broadcast %67 : vector<8x1xf32> to vector<8x32xf32>
    %83 = arith.mulf %1, %82 : vector<8x32xf32>
    %84 = arith.addf %81, %83 : vector<8x32xf32>
    %c0_44 = arith.constant 0 : index
    %c0_45 = arith.constant 0 : index
    %85 = vector.load %arg17[%c0_44, %c0_45] : memref<8x32xf32, #tpu.memory_space<vmem>>, vector<8x32xf32>
    tpu.vector_store %arg17[%c0_44, %c0_45], %84 {strides = array<i32>} : memref<8x32xf32, #tpu.memory_space<vmem>>, vector<8x32xf32>,
    %c0_46 = arith.constant 0 : index
    %c0_47 = arith.constant 0 : index
    %86 = vector.load %arg18[%c0_46, %c0_47] : memref<8x32xf32, #tpu.memory_space<vmem>>, vector<8x32xf32>
    tpu.vector_store %arg18[%c0_46, %c0_47], %77 {strides = array<i32>} : memref<8x32xf32, #tpu.memory_space<vmem>>, vector<8x32xf32>,
    return
  }
}

</mosaic_0001>

<llo_original>
// kernel: stlstm_forward.1
$region0: #{stlstm_forward.1}
  #allocation0 [shape = 'u32[]', space=smem, size = 0x4, offset = 0x4, fixed_abs, tag = 'smem constant byte address 0x4 - core index']
  #allocation1 [shape = 'u32[144,128]{1,0:T(1,128)}', space=vmem, size = 0x12000, scoped, tag = 'internal scratch']
  %s0 = inlined_call_operand.vmem [shape: f32[8,16], index: 0, kind: input, shape index: {}]
  %s1 = inlined_call_operand.vmem [shape: f32[8,32], index: 1, kind: input, shape index: {}]
  %s2 = inlined_call_operand.vmem [shape: f32[8,32], index: 2, kind: input, shape index: {}]
  %s3 = inlined_call_operand.hbm [shape: f32[8,8], index: 3, kind: input, shape index: {}]
  %s4 = inlined_call_operand.hbm [shape: f32[8,8], index: 4, kind: input, shape index: {}]
  %s5 = inlined_call_operand.hbm [shape: f32[8,8], index: 5, kind: input, shape index: {}]
  %s6 = inlined_call_operand.hbm [shape: f32[8,8], index: 6, kind: input, shape index: {}]
  %s7 = inlined_call_operand.vmem [shape: f32[8,1], index: 7, kind: input, shape index: {}]
  %s8 = inlined_call_operand.vmem [shape: f32[8,1], index: 8, kind: input, shape index: {}]
  %s9 = inlined_call_operand.vmem [shape: f32[8,1], index: 9, kind: input, shape index: {}]
  %s10 = inlined_call_operand.vmem [shape: f32[8,1], index: 10, kind: input, shape index: {}]
  %s11 = inlined_call_operand.vmem [shape: f32[8,1], index: 11, kind: input, shape index: {}]
  %s12 = inlined_call_operand.vmem [shape: f32[16,128], index: 12, kind: input, shape index: {}]
  %s13 = inlined_call_operand.vmem [shape: f32[32,128], index: 13, kind: input, shape index: {}]
  %s14 = inlined_call_operand.hbm [shape: f32[8,128], index: 14, kind: input, shape index: {}]
  %s15 = inlined_call_operand.hbm [shape: f32[8,128], index: 15, kind: input, shape index: {}]
  %s16 = inlined_call_operand.hbm [shape: f32[1,128], index: 16, kind: input, shape index: {}]
  %s17 = inlined_call_operand.hbm [shape: f32[8,32], index: 17, kind: output, shape index: {0}]
  %s18 = inlined_call_operand.hbm [shape: f32[8,32], index: 18, kind: output, shape index: {1}]
  %19 = xla_tuple %s17, %s18
  %s20 = sld [smem:[#allocation0]]
  $region114: #{stlstm_forward.1} parent=0
    _
  %s22 = ssub.s32 1, %s20
  %s23 = scalar_select 0, %s22, %s20
  $region1: #{stlstm_forward.1} parent=0
    #allocation2 [shape = 'u8[4096]{0}', space=vmem, size = 0x1000, scoped, tag = 'input window, operand 3, single buffered']
    #allocation3 [shape = 's32[1]{0}', space=sflag, size = 0x4, scoped, tag = 'scoped memory for stlstm_forward.1']
    #allocation4 [shape = 's32[1]{0}', space=sflag, size = 0x4, scoped, tag = 'scoped memory for stlstm_forward.1']
    #allocation5 [shape = 'u8[4096]{0}', space=vmem, size = 0x1000, scoped, tag = 'input window, operand 4, single buffered']
    #allocation6 [shape = 's32[1]{0}', space=sflag, size = 0x4, scoped, tag = 'scoped memory for stlstm_forward.1']
    #allocation7 [shape = 'u8[4096]{0}', space=vmem, size = 0x1000, scoped, tag = 'input window, operand 5, single buffered']
    #allocation8 [shape = 'u8[4096]{0}', space=vmem, size = 0x1000, scoped, tag = 'input window, operand 6, single buffered']
    #allocation9 [shape = 's32[1]{0}', space=sflag, size = 0x4, scoped, tag = 'scoped memory for stlstm_forward.1']
    #allocation10 [shape = 'u8[4096]{0}', space=vmem, size = 0x1000, scoped, tag = 'input window, operand 14, single buffered']
    #allocation11 [shape = 'u8[4096]{0}', space=vmem, size = 0x1000, scoped, tag = 'input window, operand 15, single buffered']
    #allocation12 [shape = 's32[1]{0}', space=sflag, size = 0x4, scoped, tag = 'scoped memory for stlstm_forward.1']
    #allocation13 [shape = 'u8[512]{0}', space=vmem, size = 0x400, scoped, tag = 'input window, operand 16, single buffered']
    #allocation14 [shape = 'u8[4096]{0}', space=vmem, size = 0x1000, scoped, tag = 'output window, operand 0, single buffered']
    #allocation15 [shape = 'u8[4096]{0}', space=vmem, size = 0x1000, scoped, tag = 'output window, operand 1, single buffered']
    #allocation16 [shape = 's32[1]{0}', space=sflag, size = 0x4, scoped, tag = 'scoped memory for stlstm_forward.1']
    %24 = vsyncpa [#allocation3], 0
    %25 = vsyncpa [#allocation6], 0
    %26 = vsyncpa [#allocation9], 0
    %27 = vsyncpa [#allocation12], 0
    %28 = vsyncpa [#allocation4], 0
    %29 = vsyncpa [#allocation16], 0
    // Predicated region
    $region2: #{stlstm_forward.1} parent=1 // pred_check
      _
    $region3: #{stlstm_forward.1} parent=1 // pred_check_branch
      %31 = sbr.rel (0) target = $region5
    $region4: #{stlstm_forward.1} parent=1 // pred_region
      _
    $region5: #{stlstm_forward.1} parent=1 // pred_fallthru
      _
    // Predicated region
    $region6: #{stlstm_forward.1} parent=1 // pred_check
      _
    $region7: #{stlstm_forward.1} parent=1 // pred_check_branch
      %33 = sbr.rel (0) target = $region9
    $region8: #{stlstm_forward.1} parent=1 // pred_region
      _
    $region9: #{stlstm_forward.1} parent=1 // pred_fallthru
      _
    // Predicated region
    $region10: #{stlstm_forward.1} parent=1 // pred_check
      _
    $region11: #{stlstm_forward.1} parent=1 // pred_check_branch
      %35 = sbr.rel (0) target = $region13
    $region12: #{stlstm_forward.1} parent=1 // pred_region
      _
    $region13: #{stlstm_forward.1} parent=1 // pred_fallthru
      _
    // Predicated region
    $region14: #{stlstm_forward.1} parent=1 // pred_check
      _
    $region15: #{stlstm_forward.1} parent=1 // pred_check_branch
      %37 = sbr.rel (0) target = $region17
    $region16: #{stlstm_forward.1} parent=1 // pred_region
      %s39 = ssub.s32 128, 128
      %40 = vsyncadd [#allocation3], %s39
      %s42 = sshll.u32 [#allocation2], 4
      %s43 = int_to_ptr.vmem [resolvable:$true] %s42
      %45 = dma.hbm_to_vmem [thread:$0]  %s3, 128, %s43, [#allocation3]
    $region17: #{stlstm_forward.1} parent=1 // pred_fallthru
      _
    // Predicated region
    $region18: #{stlstm_forward.1} parent=1 // pred_check
      _
    $region19: #{stlstm_forward.1} parent=1 // pred_check_branch
      %47 = sbr.rel (0) target = $region21
    $region20: #{stlstm_forward.1} parent=1 // pred_region
      %s49 = ssub.s32 128, 128
      %50 = vsyncadd [#allocation6], %s49
      %s52 = sshll.u32 [#allocation5], 4
      %s53 = int_to_ptr.vmem [resolvable:$true] %s52
      %55 = dma.hbm_to_vmem [thread:$0]  %s4, 128, %s53, [#allocation6]
    $region21: #{stlstm_forward.1} parent=1 // pred_fallthru
      _
    // Predicated region
    $region22: #{stlstm_forward.1} parent=1 // pred_check
      _
    $region23: #{stlstm_forward.1} parent=1 // pred_check_branch
      %57 = sbr.rel (0) target = $region25
    $region24: #{stlstm_forward.1} parent=1 // pred_region
      %s59 = ssub.s32 128, 128
      %60 = vsyncadd [#allocation6], %s59
      %s62 = sshll.u32 [#allocation7], 4
      %s63 = int_to_ptr.vmem [resolvable:$true] %s62
      %65 = dma.hbm_to_vmem [thread:$0]  %s5, 128, %s63, [#allocation6]
    $region25: #{stlstm_forward.1} parent=1 // pred_fallthru
      _
    // Predicated region
    $region26: #{stlstm_forward.1} parent=1 // pred_check
      _
    $region27: #{stlstm_forward.1} parent=1 // pred_check_branch
      %67 = sbr.rel (0) target = $region29
    $region28: #{stlstm_forward.1} parent=1 // pred_region
      %s69 = ssub.s32 128, 128
      %70 = vsyncadd [#allocation9], %s69
      %s72 = sshll.u32 [#allocation8], 4
      %s73 = int_to_ptr.vmem [resolvable:$true] %s72
      %75 = dma.hbm_to_vmem [thread:$0]  %s6, 128, %s73, [#allocation9]
    $region29: #{stlstm_forward.1} parent=1 // pred_fallthru
      _
    // Predicated region
    $region30: #{stlstm_forward.1} parent=1 // pred_check
      _
    $region31: #{stlstm_forward.1} parent=1 // pred_check_branch
      %77 = sbr.rel (0) target = $region33
    $region32: #{stlstm_forward.1} parent=1 // pred_region
      _
    $region33: #{stlstm_forward.1} parent=1 // pred_fallthru
      _
    // Predicated region
    $region34: #{stlstm_forward.1} parent=1 // pred_check
      _
    $region35: #{stlstm_forward.1} parent=1 // pred_check_branch
      %79 = sbr.rel (0) target = $region37
    $region36: #{stlstm_forward.1} parent=1 // pred_region
      _
    $region37: #{stlstm_forward.1} parent=1 // pred_fallthru
      _
    // Predicated region
    $region38: #{stlstm_forward.1} parent=1 // pred_check
      _
    $region39: #{stlstm_forward.1} parent=1 // pred_check_branch
      %81 = sbr.rel (0) target = $region41
    $region40: #{stlstm_forward.1} parent=1 // pred_region
      _
    $region41: #{stlstm_forward.1} parent=1 // pred_fallthru
      _
    // Predicated region
    $region42: #{stlstm_forward.1} parent=1 // pred_check
      _
    $region43: #{stlstm_forward.1} parent=1 // pred_check_branch
      %83 = sbr.rel (0) target = $region45
    $region44: #{stlstm_forward.1} parent=1 // pred_region
      _
    $region45: #{stlstm_forward.1} parent=1 // pred_fallthru
      _
    // Predicated region
    $region46: #{stlstm_forward.1} parent=1 // pred_check
      _
    $region47: #{stlstm_forward.1} parent=1 // pred_check_branch
      %85 = sbr.rel (0) target = $region49
    $region48: #{stlstm_forward.1} parent=1 // pred_region
      _
    $region49: #{stlstm_forward.1} parent=1 // pred_fallthru
      _
    // Predicated region
    $region50: #{stlstm_forward.1} parent=1 // pred_check
      _
    $region51: #{stlstm_forward.1} parent=1 // pred_check_branch
      %87 = sbr.rel (0) target = $region53
    $region52: #{stlstm_forward.1} parent=1 // pred_region
      _
    $region53: #{stlstm_forward.1} parent=1 // pred_fallthru
      _
    // Predicated region
    $region54: #{stlstm_forward.1} parent=1 // pred_check
      _
    $region55: #{stlstm_forward.1} parent=1 // pred_check_branch
      %89 = sbr.rel (0) target = $region57
    $region56: #{stlstm_forward.1} parent=1 // pred_region
      _
    $region57: #{stlstm_forward.1} parent=1 // pred_fallthru
      _
    // Predicated region
    $region58: #{stlstm_forward.1} parent=1 // pred_check
      _
    $region59: #{stlstm_forward.1} parent=1 // pred_check_branch
      %91 = sbr.rel (0) target = $region61
    $region60: #{stlstm_forward.1} parent=1 // pred_region
      %s93 = ssub.s32 128, 128
      %94 = vsyncadd [#allocation9], %s93
      %s96 = sshll.u32 [#allocation10], 4
      %s97 = int_to_ptr.vmem [resolvable:$true] %s96
      %99 = dma.hbm_to_vmem [thread:$0]  %s14, 128, %s97, [#allocation9]
    $region61: #{stlstm_forward.1} parent=1 // pred_fallthru
      _
    // Predicated region
    $region62: #{stlstm_forward.1} parent=1 // pred_check
      _
    $region63: #{stlstm_forward.1} parent=1 // pred_check_branch
      %101 = sbr.rel (0) target = $region65
    $region64: #{stlstm_forward.1} parent=1 // pred_region
      %s103 = ssub.s32 128, 128
      %104 = vsyncadd [#allocation12], %s103
      %s106 = sshll.u32 [#allocation11], 4
      %s107 = int_to_ptr.vmem [resolvable:$true] %s106
      %109 = dma.hbm_to_vmem [thread:$0]  %s15, 128, %s107, [#allocation12]
    $region65: #{stlstm_forward.1} parent=1 // pred_fallthru
      _
    // Predicated region
    $region66: #{stlstm_forward.1} parent=1 // pred_check
      _
    $region67: #{stlstm_forward.1} parent=1 // pred_check_branch
      %111 = sbr.rel (0) target = $region69
    $region68: #{stlstm_forward.1} parent=1 // pred_region
      %s113 = ssub.s32 16, 16
      %114 = vsyncadd [#allocation12], %s113
      %s116 = sshll.u32 [#allocation13], 4
      %s117 = int_to_ptr.vmem [resolvable:$true] %s116
      %119 = dma.hbm_to_vmem [thread:$0]  %s16, 16, %s117, [#allocation12]
    $region69: #{stlstm_forward.1} parent=1 // pred_fallthru
      _
    // Predicated region
    $region70: #{stlstm_forward.1} parent=1 // pred_check
      _
    $region71: #{stlstm_forward.1} parent=1 // pred_check_branch
      %121 = sbr.rel (0) target = $region73
    $region72: #{stlstm_forward.1} parent=1 // pred_region
      %122 = dma.done [#allocation3], 128
    $region73: #{stlstm_forward.1} parent=1 // pred_fallthru
      _
    // Predicated region
    $region74: #{stlstm_forward.1} parent=1 // pred_check
      _
    $region75: #{stlstm_forward.1} parent=1 // pred_check_branch
      %124 = sbr.rel (0) target = $region77
    $region76: #{stlstm_forward.1} parent=1 // pred_region
      %125 = dma.done [#allocation6], 128
    $region77: #{stlstm_forward.1} parent=1 // pred_fallthru
      _
    // Predicated region
    $region78: #{stlstm_forward.1} parent=1 // pred_check
      _
    $region79: #{stlstm_forward.1} parent=1 // pred_check_branch
      %127 = sbr.rel (0) target = $region81
    $region80: #{stlstm_forward.1} parent=1 // pred_region
      %128 = dma.done [#allocation6], 128
    $region81: #{stlstm_forward.1} parent=1 // pred_fallthru
      _
    // Predicated region
    $region82: #{stlstm_forward.1} parent=1 // pred_check
      _
    $region83: #{stlstm_forward.1} parent=1 // pred_check_branch
      %130 = sbr.rel (0) target = $region85
    $region84: #{stlstm_forward.1} parent=1 // pred_region
      %131 = dma.done [#allocation9], 128
    $region85: #{stlstm_forward.1} parent=1 // pred_fallthru
      _
    // Predicated region
    $region86: #{stlstm_forward.1} parent=1 // pred_check
      _
    $region87: #{stlstm_forward.1} parent=1 // pred_check_branch
      %133 = sbr.rel (0) target = $region89
    $region88: #{stlstm_forward.1} parent=1 // pred_region
      %134 = dma.done [#allocation9], 128
    $region89: #{stlstm_forward.1} parent=1 // pred_fallthru
      _
    // Predicated region
    $region90: #{stlstm_forward.1} parent=1 // pred_check
      _
    $region91: #{stlstm_forward.1} parent=1 // pred_check_branch
      %136 = sbr.rel (0) target = $region93
    $region92: #{stlstm_forward.1} parent=1 // pred_region
      %137 = dma.done [#allocation12], 128
    $region93: #{stlstm_forward.1} parent=1 // pred_fallthru
      _
    // Predicated region
    $region94: #{stlstm_forward.1} parent=1 // pred_check
      _
    $region95: #{stlstm_forward.1} parent=1 // pred_check_branch
      %139 = sbr.rel (0) target = $region97
    $region96: #{stlstm_forward.1} parent=1 // pred_region
      %140 = dma.done [#allocation12], 16
    $region97: #{stlstm_forward.1} parent=1 // pred_fallthru
      _
    %v141 = vld [vmem:[%s0] sm:$0xff]
    %v142 = vld [vmem:[%s1] sm:$0xff]
    %v143 = vld [vmem:[%s2] sm:$0xff]
    %v144 = vld [vmem:[%s11] sm:$0xff]
    %v145 = vld [vmem:[#allocation2] sm:$0xff]
    %v146 = vld [vmem:[%s7] sm:$0xff]
    %v147 = vmul.f32 %v146, 0.016666668
    %149 = vset.pattern.permute.xlu0 0
    %150 = vperm.xlu0 %149, %v147
    %v151 = vpop.permute.xlu0 %150
    %v153 = vmul.f32 %v145, %v151
    %v154 = vld [vmem:[#allocation5] sm:$0xff]
    %v155 = vld [vmem:[%s8] sm:$0xff]
    %v156 = vmul.f32 %v155, 0.016666668
    %158 = vset.pattern.permute.xlu0 0
    %159 = vperm.xlu0 %158, %v156
    %v160 = vpop.permute.xlu0 %159
    %v162 = vmul.f32 %v154, %v160
    %v163 = vadd.f32 %v153, %v162
    %v164 = vld [vmem:[#allocation7] sm:$0xff]
    %v165 = vld [vmem:[%s9] sm:$0xff]
    %v166 = vmul.f32 %v165, 0.01
    %168 = vset.pattern.permute.xlu0 0
    %169 = vperm.xlu0 %168, %v166
    %v170 = vpop.permute.xlu0 %169
    %v172 = vmul.f32 %v164, %v170
    %v173 = vld [vmem:[#allocation8] sm:$0xff]
    %v174 = vld [vmem:[%s10] sm:$0xff]
    %v175 = vmul.f32 %v174, 0.01
    %177 = vset.pattern.permute.xlu0 0
    %178 = vperm.xlu0 %177, %v175
    %v179 = vpop.permute.xlu0 %178
    %v181 = vmul.f32 %v173, %v179
    %v182 = vadd.f32 %v172, %v181
    %v183 = vld [vmem:[%s12] sm:$0xff]
    %v184 = vld [vmem:[%s12 + $0x8] sm:$0xff]
    %v185 = vld [vmem:[%s13] sm:$0xff]
    %v186 = vld [vmem:[%s13 + $0x8] sm:$0xff]
    %v187 = vld [vmem:[%s13 + $0x10] sm:$0xff]
    %v188 = vld [vmem:[%s13 + $0x18] sm:$0xff]
    %vm189 = vcmask 261120
    %v191 = vsel %vm189, %v142, 0
    %193 = vmatprep.subr.mxu0 0.0
    %194 = vmatpush1.msra.mxu0 0.0
    %195 = vmatprep.subr.mxu0 0.0
    %196 = vmatpush1.msra.mxu0 0.0
    %197 = vmatprep.subr.mxu0 0.0
    %198 = vmatpush1.msra.mxu0 0.0
    %199 = vmatprep.subr.mxu0 0.0
    %200 = vmatpush1.msra.mxu0 0.0
    %201 = vmatprep.subr.mxu0 0.0
    %202 = vmatpush1.msra.mxu0 0.0
    %203 = vmatprep.subr.mxu0 0.0
    %204 = vmatpush1.msra.mxu0 0.0
    %205 = vmatprep.subr.mxu0 0.0
    %206 = vmatpush1.msra.mxu0 0.0
    %207 = vmatprep.subr.mxu0 0.0
    %208 = vmatpush1.msra.mxu0 0.0
    %209 = vmatprep.subr.mxu0 0.0
    %210 = vmatpush1.msra.mxu0 0.0
    %211 = vmatprep.subr.mxu0 0.0
    %212 = vmatpush1.msra.mxu0 0.0
    %213 = vmatprep.subr.mxu0 0.0
    %214 = vmatpush1.msra.mxu0 0.0
    %215 = vmatprep.subr.mxu0 0.0
    %216 = vmatpush1.msra.mxu0 0.0
    %217 = vmatprep.subr.mxu0 0.0
    %218 = vmatpush1.msra.mxu0 %v188
    %219 = vmatprep.subr.mxu0 0.0
    %220 = vmatpush1.msra.mxu0 %v187
    %221 = vmatprep.subr.mxu0 0.0
    %222 = vmatpush1.msra.mxu0 %v186
    %223 = vmatprep.subr.mxu0 0.0
    %224 = vmatpush1.msra.mxu0 %v185
    %225 = vmatprep.subr.mxu0 0.0
    %226 = vmatpush2.msra.mxu0 0.0
    %227 = vmatprep.subr.mxu0 0.0
    %228 = vmatpush2.msra.mxu0 0.0
    %229 = vmatprep.subr.mxu0 0.0
    %230 = vmatpush2.msra.mxu0 0.0
    %231 = vmatprep.subr.mxu0 0.0
    %232 = vmatpush2.msra.mxu0 0.0
    %233 = vmatprep.subr.mxu0 0.0
    %234 = vmatpush2.msra.mxu0 0.0
    %235 = vmatprep.subr.mxu0 0.0
    %236 = vmatpush2.msra.mxu0 0.0
    %237 = vmatprep.subr.mxu0 0.0
    %238 = vmatpush2.msra.mxu0 0.0
    %239 = vmatprep.subr.mxu0 0.0
    %240 = vmatpush2.msra.mxu0 0.0
    %241 = vmatprep.subr.mxu0 0.0
    %242 = vmatpush2.msra.mxu0 0.0
    %243 = vmatprep.subr.mxu0 0.0
    %244 = vmatpush2.msra.mxu0 0.0
    %245 = vmatprep.subr.mxu0 0.0
    %246 = vmatpush2.msra.mxu0 0.0
    %247 = vmatprep.subr.mxu0 0.0
    %248 = vmatpush2.msra.mxu0 0.0
    %249 = vmatprep.subr.mxu0 0.0
    %250 = vmatpush2.msra.mxu0 0.0
    %251 = vmatprep.subr.mxu0 0.0
    %252 = vmatpush2.msra.mxu0 0.0
    %253 = vmatprep.subr.mxu0 0.0
    %254 = vmatpush2.msra.mxu0 0.0
    %255 = vmatprep.subr.mxu0 0.0
    %256 = vmatpush2.msra.mxu0 0.0
    %257 = vmatprep.mubr.f32.mxu0 0.0
    %258 = vmatmul.mubr.f32.gmra.mxu0 %v191
    %v259 = vpop.f32.mrf.mxu0
    %v260 = vadd.f32 0.0, %v259
    %v261 = vpop.f32.mrf.mxu0
    %262 = vdwg.mxu0
    %vm263 = vcmask 130048
    %v265 = vsel %vm263, %v141, 0
    %267 = vmatprep.subr.mxu0 0.0
    %268 = vmatpush1.msra.mxu0 0.0
    %269 = vmatprep.subr.mxu0 0.0
    %270 = vmatpush1.msra.mxu0 0.0
    %271 = vmatprep.subr.mxu0 0.0
    %272 = vmatpush1.msra.mxu0 0.0
    %273 = vmatprep.subr.mxu0 0.0
    %274 = vmatpush1.msra.mxu0 0.0
    %275 = vmatprep.subr.mxu0 0.0
    %276 = vmatpush1.msra.mxu0 0.0
    %277 = vmatprep.subr.mxu0 0.0
    %278 = vmatpush1.msra.mxu0 0.0
    %279 = vmatprep.subr.mxu0 0.0
    %280 = vmatpush1.msra.mxu0 0.0
    %281 = vmatprep.subr.mxu0 0.0
    %282 = vmatpush1.msra.mxu0 0.0
    %283 = vmatprep.subr.mxu0 0.0
    %284 = vmatpush1.msra.mxu0 0.0
    %285 = vmatprep.subr.mxu0 0.0
    %286 = vmatpush1.msra.mxu0 0.0
    %287 = vmatprep.subr.mxu0 0.0
    %288 = vmatpush1.msra.mxu0 0.0
    %289 = vmatprep.subr.mxu0 0.0
    %290 = vmatpush1.msra.mxu0 0.0
    %291 = vmatprep.subr.mxu0 0.0
    %292 = vmatpush1.msra.mxu0 0.0
    %293 = vmatprep.subr.mxu0 0.0
    %294 = vmatpush1.msra.mxu0 0.0
    %295 = vmatprep.subr.mxu0 0.0
    %296 = vmatpush1.msra.mxu0 %v184
    %297 = vmatprep.subr.mxu0 0.0
    %298 = vmatpush1.msra.mxu0 %v183
    %299 = vmatprep.subr.mxu0 0.0
    %300 = vmatpush2.msra.mxu0 0.0
    %301 = vmatprep.subr.mxu0 0.0
    %302 = vmatpush2.msra.mxu0 0.0
    %303 = vmatprep.subr.mxu0 0.0
    %304 = vmatpush2.msra.mxu0 0.0
    %305 = vmatprep.subr.mxu0 0.0
    %306 = vmatpush2.msra.mxu0 0.0
    %307 = vmatprep.subr.mxu0 0.0
    %308 = vmatpush2.msra.mxu0 0.0
    %309 = vmatprep.subr.mxu0 0.0
    %310 = vmatpush2.msra.mxu0 0.0
    %311 = vmatprep.subr.mxu0 0.0
    %312 = vmatpush2.msra.mxu0 0.0
    %313 = vmatprep.subr.mxu0 0.0
    %314 = vmatpush2.msra.mxu0 0.0
    %315 = vmatprep.subr.mxu0 0.0
    %316 = vmatpush2.msra.mxu0 0.0
    %317 = vmatprep.subr.mxu0 0.0
    %318 = vmatpush2.msra.mxu0 0.0
    %319 = vmatprep.subr.mxu0 0.0
    %320 = vmatpush2.msra.mxu0 0.0
    %321 = vmatprep.subr.mxu0 0.0
    %322 = vmatpush2.msra.mxu0 0.0
    %323 = vmatprep.subr.mxu0 0.0
    %324 = vmatpush2.msra.mxu0 0.0
    %325 = vmatprep.subr.mxu0 0.0
    %326 = vmatpush2.msra.mxu0 0.0
    %327 = vmatprep.subr.mxu0 0.0
    %328 = vmatpush2.msra.mxu0 0.0
    %329 = vmatprep.subr.mxu0 0.0
    %330 = vmatpush2.msra.mxu0 0.0
    %331 = vmatprep.mubr.f32.mxu0 0.0
    %332 = vmatmul.mubr.f32.gmra.mxu0 %v265
    %v333 = vpop.f32.mrf.mxu0
    %v334 = vadd.f32 %v260, %v333
    %v335 = vpop.f32.mrf.mxu0
    %336 = vdwg.mxu0
    %v337 = vld [vmem:[#allocation10] sm:$0xff]
    %vm338 = vcmask 64512
    %v340 = vsel %vm338, %v163, 0
    %342 = vmatprep.subr.mxu0 0.0
    %343 = vmatpush1.msra.mxu0 0.0
    %344 = vmatprep.subr.mxu0 0.0
    %345 = vmatpush1.msra.mxu0 0.0
    %346 = vmatprep.subr.mxu0 0.0
    %347 = vmatpush1.msra.mxu0 0.0
    %348 = vmatprep.subr.mxu0 0.0
    %349 = vmatpush1.msra.mxu0 0.0
    %350 = vmatprep.subr.mxu0 0.0
    %351 = vmatpush1.msra.mxu0 0.0
    %352 = vmatprep.subr.mxu0 0.0
    %353 = vmatpush1.msra.mxu0 0.0
    %354 = vmatprep.subr.mxu0 0.0
    %355 = vmatpush1.msra.mxu0 0.0
    %356 = vmatprep.subr.mxu0 0.0
    %357 = vmatpush1.msra.mxu0 0.0
    %358 = vmatprep.subr.mxu0 0.0
    %359 = vmatpush1.msra.mxu0 0.0
    %360 = vmatprep.subr.mxu0 0.0
    %361 = vmatpush1.msra.mxu0 0.0
    %362 = vmatprep.subr.mxu0 0.0
    %363 = vmatpush1.msra.mxu0 0.0
    %364 = vmatprep.subr.mxu0 0.0
    %365 = vmatpush1.msra.mxu0 0.0
    %366 = vmatprep.subr.mxu0 0.0
    %367 = vmatpush1.msra.mxu0 0.0
    %368 = vmatprep.subr.mxu0 0.0
    %369 = vmatpush1.msra.mxu0 0.0
    %370 = vmatprep.subr.mxu0 0.0
    %371 = vmatpush1.msra.mxu0 0.0
    %372 = vmatprep.subr.mxu0 0.0
    %373 = vmatpush1.msra.mxu0 %v337
    %374 = vmatprep.subr.mxu0 0.0
    %375 = vmatpush2.msra.mxu0 0.0
    %376 = vmatprep.subr.mxu0 0.0
    %377 = vmatpush2.msra.mxu0 0.0
    %378 = vmatprep.subr.mxu0 0.0
    %379 = vmatpush2.msra.mxu0 0.0
    %380 = vmatprep.subr.mxu0 0.0
    %381 = vmatpush2.msra.mxu0 0.0
    %382 = vmatprep.subr.mxu0 0.0
    %383 = vmatpush2.msra.mxu0 0.0
    %384 = vmatprep.subr.mxu0 0.0
    %385 = vmatpush2.msra.mxu0 0.0
    %386 = vmatprep.subr.mxu0 0.0
    %387 = vmatpush2.msra.mxu0 0.0
    %388 = vmatprep.subr.mxu0 0.0
    %389 = vmatpush2.msra.mxu0 0.0
    %390 = vmatprep.subr.mxu0 0.0
    %391 = vmatpush2.msra.mxu0 0.0
    %392 = vmatprep.subr.mxu0 0.0
    %393 = vmatpush2.msra.mxu0 0.0
    %394 = vmatprep.subr.mxu0 0.0
    %395 = vmatpush2.msra.mxu0 0.0
    %396 = vmatprep.subr.mxu0 0.0
    %397 = vmatpush2.msra.mxu0 0.0
    %398 = vmatprep.subr.mxu0 0.0
    %399 = vmatpush2.msra.mxu0 0.0
    %400 = vmatprep.subr.mxu0 0.0
    %401 = vmatpush2.msra.mxu0 0.0
    %402 = vmatprep.subr.mxu0 0.0
    %403 = vmatpush2.msra.mxu0 0.0
    %404 = vmatprep.subr.mxu0 0.0
    %405 = vmatpush2.msra.mxu0 0.0
    %406 = vmatprep.mubr.f32.mxu0 0.0
    %407 = vmatmul.mubr.f32.gmra.mxu0 %v340
    %v408 = vpop.f32.mrf.mxu0
    %v409 = vadd.f32 0.0, %v408
    %v410 = vpop.f32.mrf.mxu0
    %411 = vdwg.mxu0
    %v412 = vadd.f32 %v334, %v409
    %v413 = vld [vmem:[#allocation11] sm:$0xff]
    %v415 = vsel %vm338, %v182, 0
    %417 = vmatprep.subr.mxu0 0.0
    %418 = vmatpush1.msra.mxu0 0.0
    %419 = vmatprep.subr.mxu0 0.0
    %420 = vmatpush1.msra.mxu0 0.0
    %421 = vmatprep.subr.mxu0 0.0
    %422 = vmatpush1.msra.mxu0 0.0
    %423 = vmatprep.subr.mxu0 0.0
    %424 = vmatpush1.msra.mxu0 0.0
    %425 = vmatprep.subr.mxu0 0.0
    %426 = vmatpush1.msra.mxu0 0.0
    %427 = vmatprep.subr.mxu0 0.0
    %428 = vmatpush1.msra.mxu0 0.0
    %429 = vmatprep.subr.mxu0 0.0
    %430 = vmatpush1.msra.mxu0 0.0
    %431 = vmatprep.subr.mxu0 0.0
    %432 = vmatpush1.msra.mxu0 0.0
    %433 = vmatprep.subr.mxu0 0.0
    %434 = vmatpush1.msra.mxu0 0.0
    %435 = vmatprep.subr.mxu0 0.0
    %436 = vmatpush1.msra.mxu0 0.0
    %437 = vmatprep.subr.mxu0 0.0
    %438 = vmatpush1.msra.mxu0 0.0
    %439 = vmatprep.subr.mxu0 0.0
    %440 = vmatpush1.msra.mxu0 0.0
    %441 = vmatprep.subr.mxu0 0.0
    %442 = vmatpush1.msra.mxu0 0.0
    %443 = vmatprep.subr.mxu0 0.0
    %444 = vmatpush1.msra.mxu0 0.0
    %445 = vmatprep.subr.mxu0 0.0
    %446 = vmatpush1.msra.mxu0 0.0
    %447 = vmatprep.subr.mxu0 0.0
    %448 = vmatpush1.msra.mxu0 %v413
    %449 = vmatprep.subr.mxu0 0.0
    %450 = vmatpush2.msra.mxu0 0.0
    %451 = vmatprep.subr.mxu0 0.0
    %452 = vmatpush2.msra.mxu0 0.0
    %453 = vmatprep.subr.mxu0 0.0
    %454 = vmatpush2.msra.mxu0 0.0
    %455 = vmatprep.subr.mxu0 0.0
    %456 = vmatpush2.msra.mxu0 0.0
    %457 = vmatprep.subr.mxu0 0.0
    %458 = vmatpush2.msra.mxu0 0.0
    %459 = vmatprep.subr.mxu0 0.0
    %460 = vmatpush2.msra.mxu0 0.0
    %461 = vmatprep.subr.mxu0 0.0
    %462 = vmatpush2.msra.mxu0 0.0
    %463 = vmatprep.subr.mxu0 0.0
    %464 = vmatpush2.msra.mxu0 0.0
    %465 = vmatprep.subr.mxu0 0.0
    %466 = vmatpush2.msra.mxu0 0.0
    %467 = vmatprep.subr.mxu0 0.0
    %468 = vmatpush2.msra.mxu0 0.0
    %469 = vmatprep.subr.mxu0 0.0
    %470 = vmatpush2.msra.mxu0 0.0
    %471 = vmatprep.subr.mxu0 0.0
    %472 = vmatpush2.msra.mxu0 0.0
    %473 = vmatprep.subr.mxu0 0.0
    %474 = vmatpush2.msra.mxu0 0.0
    %475 = vmatprep.subr.mxu0 0.0
    %476 = vmatpush2.msra.mxu0 0.0
    %477 = vmatprep.subr.mxu0 0.0
    %478 = vmatpush2.msra.mxu0 0.0
    %479 = vmatprep.subr.mxu0 0.0
    %480 = vmatpush2.msra.mxu0 0.0
    %481 = vmatprep.mubr.f32.mxu0 0.0
    %482 = vmatmul.mubr.f32.gmra.mxu0 %v415
    %v483 = vpop.f32.mrf.mxu0
    %v484 = vadd.f32 0.0, %v483
    %v485 = vpop.f32.mrf.mxu0
    %486 = vdwg.mxu0
    %v487 = vadd.f32 %v412, %v484
    %v488 = vld [vmem:[#allocation13] sm:$0x1]
    %v490 = vlaneseq
    %v491 = vshrl.u32 %v490, 7
    %v492 = vsub.s32 0, %v491
    %v493 = vrot.slane %v488, %v492
    %v495 = vadd.f32 %v487, %v493
    %v496 = vxor.u32 %v495, 2147483648
    %v497 = vmul.f32 %v496, 1.442695
    %v498 = vpow.pop %v497
    %v499 = vadd.f32 %v498, 1.0
    %v500 = vrcp.pop %v499
    %v501 = vmul.f32 1.0, %v500
    %v502 = vtanh.pop %v495
    %v503 = vmul.f32 %v144, %v144
    %v504 = vmul.f32 %v503, %v144
    %v505 = vsub.f32 1.0, %v144
    %507 = vrot.lane.b32.xlu0 %v143, 32
    %v508 = vpop.permute.xlu0 %507
    %v510 = vmul.f32 %v501, %v508
    %512 = vset.pattern.permute.xlu0 0
    %513 = vperm.xlu0 %512, %v503
    %v514 = vpop.permute.xlu0 %513
    %v516 = vmul.f32 %v510, %v514
    %518 = vrot.lane.b32.xlu0 %v502, 32
    %v519 = vpop.permute.xlu0 %518
    %v521 = vmul.f32 %v501, %v519
    %523 = vset.pattern.permute.xlu0 0
    %524 = vperm.xlu0 %523, %v504
    %v525 = vpop.permute.xlu0 %524
    %v527 = vmul.f32 %v521, %v525
    %529 = vrot.lane.b32.xlu0 %v527, 32
    %v530 = vpop.permute.xlu0 %529
    %v532 = vadd.f32 %v516, %v530
    %534 = vset.pattern.permute.xlu0 0
    %535 = vperm.xlu0 %534, %v505
    %v536 = vpop.permute.xlu0 %535
    %v538 = vmul.f32 %v143, %v536
    %540 = vrot.lane.b32.xlu0 %v538, 32
    %v541 = vpop.permute.xlu0 %540
    %v543 = vadd.f32 %v532, %v541
    %v544 = vtanh.pop %v543
    %546 = vrot.lane.b32.xlu0 %v544, 32
    %v547 = vpop.permute.xlu0 %546
    %v549 = vmul.f32 %v501, %v547
    %v550 = vmul.f32 %v549, %v514
    %v551 = vmul.f32 %v142, %v536
    %553 = vrot.lane.b32.xlu0 %v551, 64
    %v554 = vpop.permute.xlu0 %553
    %v556 = vadd.f32 %v550, %v554
    %558 = vrot.lane.b32.xlu0 %v556, 64
    %v559 = vpop.permute.xlu0 %558
    %561 = vst.msk [vmem:[#allocation14] sm:$0xff] %vm189, %v559
    %563 = vrot.lane.b32.xlu0 %v543, 96
    %v564 = vpop.permute.xlu0 %563
    %566 = vst.msk [vmem:[#allocation15] sm:$0xff] %vm189, %v564
    // Predicated region
    $region98: #{stlstm_forward.1} parent=1 // pred_check
      _
    $region99: #{stlstm_forward.1} parent=1 // pred_check_branch
      %568 = sbr.rel (0) target = $region101
    $region100: #{stlstm_forward.1} parent=1 // pred_region
      %s570 = ssub.s32 128, 128
      %571 = vsyncadd [#allocation4], %s570
      %s573 = sshll.u32 [#allocation14], 4
      %s574 = int_to_ptr.vmem [resolvable:$true] %s573
      %576 = dma.vmem_to_hbm [thread:$0]  %s574, 128, %s17, [#allocation4]
    $region101: #{stlstm_forward.1} parent=1 // pred_fallthru
      _
    // Predicated region
    $region102: #{stlstm_forward.1} parent=1 // pred_check
      _
    $region103: #{stlstm_forward.1} parent=1 // pred_check_branch
      %578 = sbr.rel (0) target = $region105
    $region104: #{stlstm_forward.1} parent=1 // pred_region
      %s580 = ssub.s32 128, 128
      %581 = vsyncadd [#allocation16], %s580
      %s583 = sshll.u32 [#allocation15], 4
      %s584 = int_to_ptr.vmem [resolvable:$true] %s583
      %586 = dma.vmem_to_hbm [thread:$0]  %s584, 128, %s18, [#allocation16]
    $region105: #{stlstm_forward.1} parent=1 // pred_fallthru
      _
    // Predicated region
    $region106: #{stlstm_forward.1} parent=1 // pred_check
      _
    $region107: #{stlstm_forward.1} parent=1 // pred_check_branch
      %588 = sbr.rel (0) target = $region109
    $region108: #{stlstm_forward.1} parent=1 // pred_region
      %589 = dma.done [#allocation4], 128
    $region109: #{stlstm_forward.1} parent=1 // pred_fallthru
      _
    // Predicated region
    $region110: #{stlstm_forward.1} parent=1 // pred_check
      _
    $region111: #{stlstm_forward.1} parent=1 // pred_check_branch
      %591 = sbr.rel (0) target = $region113
    $region112: #{stlstm_forward.1} parent=1 // pred_region
      %592 = dma.done [#allocation16], 128
    $region113: #{stlstm_forward.1} parent=1 // pred_fallthru
      _
    %593 = vsyncpa [#allocation3], 1
    %594 = vsyncpa [#allocation6], 1
    %595 = vsyncpa [#allocation9], 1
    %596 = vsyncpa [#allocation12], 1
    %597 = vsyncpa [#allocation4], 1
    %598 = vsyncpa [#allocation16], 1

</llo_original>
